<compile_context>
chip_gen: v7x
topology: tpu7x:2x2x1
jax: 0.10.0
libtpu: 0.0.40
codegen_flags: <defaults>
</compile_context>

<pallas_src>
import functools
import math

import jax
import jax.numpy as jnp
import numpy as np
from jax.experimental import pallas as pl
from jax.experimental.pallas import tpu as pltpu


# ----------------------------------------------------------------------------
# Parameter construction / folding (glue, plain JAX — runs once on tiny arrays)
# ----------------------------------------------------------------------------
def _xavier_uniform(key, out_f, in_f):
    bound = math.sqrt(6.0 / (in_f + out_f))
    return jax.random.uniform(key, (out_f, in_f), jnp.float32, -bound, bound)


def _init_quat_linear(key, features):
    kr, ki, kj, kk = jax.random.split(key, 4)
    wr = _xavier_uniform(kr, features, features)
    wi = _xavier_uniform(ki, features, features)
    wj = _xavier_uniform(kj, features, features)
    wk = _xavier_uniform(kk, features, features)
    bias = jnp.zeros((features, 4), jnp.float32)  # nn.init.zeros_
    return (wr, wi, wj, wk, bias)


def _quat_big_weight_interleaved(wr, wi, wj, wk):
    """Fold the 4 Hamilton-product weights into one [4F,4F] matrix acting on the
    NATIVE interleaved layout (flat index = feature*4 + component), so
    x.reshape(B,S,4F) @ W reproduces QuaternionLinear (minus bias)."""
    # comp[d_in][d_out] = weight multiplying input component d_in in output d_out.
    comp = [[ wr,  wi,  wj,  wk],
            [-wi,  wr, -wk,  wj],
            [-wj,  wk,  wr, -wi],
            [-wk, -wj,  wi,  wr]]
    # blocks[d_in, d_out, f_in, f_out]
    blocks = jnp.stack([jnp.stack([c.T for c in row], axis=0) for row in comp], axis=0)
    F_ = wr.shape[0]
    # -> [f_in, d_in, f_out, d_out] -> [4F, 4F]
    return jnp.transpose(blocks, (2, 0, 3, 1)).reshape(4 * F_, 4 * F_)


def _fold_quat_linear(p, *, scale=1.0, weight_dtype=jnp.float32):
    wr, wi, wj, wk, bias = p
    W = _quat_big_weight_interleaved(wr, wi, wj, wk)
    b = bias.reshape(1, -1)            # (F,4) -> interleaved flat (1, 4F): free view
    if scale != 1.0:
        W = W * scale
        b = b * scale
    return W.astype(weight_dtype), b.astype(jnp.float32)


# ----------------------------------------------------------------------------
# Pallas kernel: one (batch, query-tile) grid step
# ----------------------------------------------------------------------------
def _quat_attention_kernel(store_attn,
                           xq_ref, xk_ref, xv_ref,
                           wq_ref, wk_ref, wv_ref,
                           bq_ref, bk_ref, bv_ref,
                           out_ref, *rest):
    if store_attn:
        attn_ref, kT_ref, v_ref = rest
    else:
        attn_ref = None
        kT_ref, v_ref = rest

    tq, d = xq_ref.shape
    s = xk_ref.shape[0]
    cdt = wq_ref.dtype                      # MXU compute dtype (f32 or bf16)

    def project(x, w_ref, b_ref):
        # One MXU matmul per quaternion linear: [rows, 4F] @ [4F, 4F], f32 accumulation.
        y = jnp.dot(x.astype(cdt), w_ref[...], preferred_element_type=jnp.float32)
        return y + b_ref[...]

    # K / V projections: computed once per batch element (first query tile),
    # cached in VMEM scratch (K pre-transposed so the score matmul needs no
    # per-step XLU transpose) and reused by the remaining query tiles.
    @pl.when(pl.program_id(1) == 0)
    def _():
        k_proj = project(xk_ref[...], wk_ref, bk_ref)        # (S, D) f32
        v_proj = project(xv_ref[...], wv_ref, bv_ref)        # (S, D) f32
        kT_ref[...] = k_proj.T.astype(kT_ref.dtype)          # one transpose per batch
        v_ref[...] = v_proj.astype(v_ref.dtype)

    q = project(xq_ref[...], wq_ref, bq_ref)                 # (tq, D); scale pre-folded

    # scores = Q @ K^T over the flat interleaved 4F axis — plain MXU matmul.
    scores = jnp.dot(q.astype(cdt), kT_ref[...], preferred_element_type=jnp.float32)

    # softmax over keys
    m = jnp.max(scores, axis=-1, keepdims=True)
    e = jnp.exp(scores - m)
    denom = jnp.sum(e, axis=-1, keepdims=True)
    r = pl.reciprocal(denom, approx=True)                    # EUP slot
    r = r * (2.0 - denom * r)                                # one Newton step: f32 accuracy
    w = e * r                                                # (tq, S) f32

    out_ref[...] = jnp.dot(w.astype(cdt), v_ref[...],
                           preferred_element_type=jnp.float32).astype(out_ref.dtype)

    if store_attn:
        # Direct store — no pad matmul, no iota. (If S is not a multiple of 128 the
        # tail lanes are a masked store; still far cheaper than copying via the MXU.)
        attn_ref[...] = w


# ----------------------------------------------------------------------------
# Wrapper
# ----------------------------------------------------------------------------
def _pick_q_tile(S):
    if S <= 256:
        return S
    for cand in (256, 128, 64, 32, 16, 8):
        if S % cand == 0:
            return cand
    return S


def quaternion_attention(query, key, value, params, mask=None, *,
                         compute_dtype=jnp.float32, q_tile=None,
                         return_attention=True):
    """query/key/value: [B, S, F, 4] float32.  params[name] = (wr, wi, wj, wk, bias).

    Returns (output [B,S,F,4], attention_weights [B,S,S] or None).
    compute_dtype=jnp.bfloat16 is recommended on v6e/v7x (MXU-rate matmuls with f32
    accumulation); it will not meet a 2e-4 reference tolerance. Default float32 is the
    right choice on v5e and for bit-faithful semantics.
    """
    # TODO(synk): optional attention mask (masked_fill -inf) path not implemented.
    assert mask is None
    B, S, F_, four = query.shape
    assert four == 4
    D = 4 * F_
    assert D % 128 == 0, "4*embedding_dim must be a multiple of 128 (lane dim)"
    assert S % 8 == 0, "sequence length must be a multiple of 8 (f32 sublane)"
    # TODO(synk): for very large S, switch to a flash-style online softmax over key
    # tiles so K/V/scores are not held for the full sequence in VMEM.

    scale = 1.0 / math.sqrt(F_ * 4)          # == 1/sqrt(Q.size(-2) * 4)
    wq, bq = _fold_quat_linear(params["q"], scale=scale, weight_dtype=compute_dtype)
    wk, bk = _fold_quat_linear(params["k"], weight_dtype=compute_dtype)
    wv, bv = _fold_quat_linear(params["v"], weight_dtype=compute_dtype)

    # Native interleaved flattening — free views, no transposes.
    xq = query.reshape(B, S, D)
    xk = key.reshape(B, S, D)
    xv = value.reshape(B, S, D)

    TQ = q_tile if q_tile is not None else _pick_q_tile(S)
    assert S % TQ == 0 and (TQ % 8 == 0 or TQ == S)
    nq = S // TQ

    # Explicit scoped-VMEM budget from the per-step block footprint (with headroom),
    # clamped to 64 MiB so the same setting is legal on v7x's smaller physical VMEM.
    cdt_size = jnp.dtype(compute_dtype).itemsize
    f32b = 4
    footprint = (
        3 * D * D * cdt_size                 # Wq/Wk/Wv, single-buffered VMEM residents
        + 3 * 8 * D * f32b                   # biases (sublane padded)
        + 2 * TQ * D * f32b                  # xq block, double-buffered
        + 2 * 2 * S * D * f32b               # xk/xv blocks, double-buffered
        + 2 * TQ * D * f32b                  # output block, double-buffered
        + (2 * TQ * S * f32b if return_attention else 0)  # attn block
        + 2 * S * D * cdt_size               # kT / V scratch
        + 2 * S * D * f32b                   # k/v projection temporaries
        + 4 * TQ * max(S, D) * f32b          # q / scores / e / w temporaries
    )
    vmem_limit = int(min(64 * 2 ** 20, max(32 * 2 ** 20, 2 * footprint)))

    x_spec = pl.BlockSpec((None, TQ, D), lambda b, qt: (b, qt, 0))    # per query tile
    kv_spec = pl.BlockSpec((None, S, D), lambda b, qt: (b, 0, 0))     # full keys per batch
    resident = pl.BlockSpec(memory_space=pltpu.MemorySpace.VMEM)      # weights: 1 copy, 1 DMA
    out_spec = pl.BlockSpec((None, TQ, D), lambda b, qt: (b, qt, 0))
    attn_spec = pl.BlockSpec((None, TQ, S), lambda b, qt: (b, qt, 0))

    if return_attention:
        out_shape = (jax.ShapeDtypeStruct((B, S, D), jnp.float32),
                     jax.ShapeDtypeStruct((B, S, S), jnp.float32))
        out_specs = (out_spec, attn_spec)
    else:
        out_shape = jax.ShapeDtypeStruct((B, S, D), jnp.float32)
        out_specs = out_spec

    kernel = functools.partial(_quat_attention_kernel, return_attention)

    result = pl.pallas_call(
        kernel,
        out_shape=out_shape,
        grid=(B, nq),
        in_specs=[
            x_spec,      # xq
            kv_spec,     # xk
            kv_spec,     # xv
            resident,    # Wq (scale folded in)
            resident,    # Wk
            resident,    # Wv
            resident,    # bq (scale folded in)
            resident,    # bk
            resident,    # bv
        ],
        out_specs=out_specs,
        scratch_shapes=[
            pltpu.VMEM((D, S), compute_dtype),   # K^T cache (per batch element)
            pltpu.VMEM((S, D), compute_dtype),   # V cache (per batch element)
        ],
        compiler_params=pltpu.CompilerParams(
            dimension_semantics=("parallel", "arbitrary"),
            vmem_limit_bytes=vmem_limit,
        ),
    )(xq, xk, xv, wq, wk, wv, bq, bk, bv)

    if return_attention:
        out_flat, attn = result
    else:
        out_flat, attn = result, None

    output = out_flat.reshape(B, S, F_, 4)   # free view back to [B,S,F,4]
    return output, attn


# ----------------------------------------------------------------------------
# Pure-JAX reference (mirrors the PyTorch forward) for validation
# ----------------------------------------------------------------------------
def _quat_linear_ref(x, wr, wi, wj, wk, bias):
    r, i, j, k = x[..., 0], x[..., 1], x[..., 2], x[..., 3]
    lin = lambda a, w: a @ w.T
    r_out = lin(r, wr) - lin(i, wi) - lin(j, wj) - lin(k, wk)
    i_out = lin(r, wi) + lin(i, wr) + lin(j, wk) - lin(k, wj)
    j_out = lin(r, wj) - lin(i, wk) + lin(j, wr) + lin(k, wi)
    k_out = lin(r, wk) + lin(i, wj) - lin(j, wi) + lin(k, wr)
    out = jnp.stack([r_out, i_out, j_out, k_out], axis=-1)
    return out + bias[None, None]


def _attention_ref(query, key, value, params):
    Q = _quat_linear_ref(query, *params["q"])
    K = _quat_linear_ref(key, *params["k"])
    V = _quat_linear_ref(value, *params["v"])
    scores = jnp.einsum("bqfd,bkfd->bqk", Q, K)
    scores = scores / math.sqrt(Q.shape[-2] * 4)
    w = jax.nn.softmax(scores, axis=-1)
    out = jnp.einsum("bqk,bkfd->bqfd", w, V)
    return out, w


# ----------------------------------------------------------------------------
if __name__ == "__main__":
    B, S, F = 2, 8, 32  # batch, sequence, embedding_dim

    root = jax.random.PRNGKey(0)
    kq, kk, kv, kx1, kx2, kx3 = jax.random.split(root, 6)
    params = {
        "q": _init_quat_linear(kq, F),
        "k": _init_quat_linear(kk, F),
        "v": _init_quat_linear(kv, F),
    }

    query = jax.random.normal(kx1, (B, S, F, 4), jnp.float32)
    key = jax.random.normal(kx2, (B, S, F, 4), jnp.float32)
    value = jax.random.normal(kx3, (B, S, F, 4), jnp.float32)

    run = jax.jit(lambda q, k, v, p: quaternion_attention(q, k, v, p))
    out, attn = run(query, key, value, params)
    jax.block_until_ready((out, attn))

    # attention-weights-free path (skips the B*S*S HBM writeback)
    run_noattn = jax.jit(
        lambda q, k, v, p: quaternion_attention(q, k, v, p, return_attention=False)[0])
    out2 = run_noattn(query, key, value, params)
    jax.block_until_ready(out2)

    out_ref, attn_ref = _attention_ref(query, key, value, params)
    np.testing.assert_allclose(np.asarray(out), np.asarray(out_ref), rtol=2e-4, atol=2e-4)
    np.testing.assert_allclose(np.asarray(attn), np.asarray(attn_ref), rtol=2e-4, atol=2e-4)
    np.testing.assert_allclose(np.asarray(out2), np.asarray(out_ref), rtol=2e-4, atol=2e-4)

    print("KERNEL_OK")
</pallas_src>

<mosaic_0001>
module attributes {stable_mosaic.version = 11 : i64} {
  func.func @_quat_attention_kernel(%arg0: i32, %arg1: i32, %arg2: memref<1x8x128xf32, #tpu.memory_space<vmem>>, %arg3: memref<1x8x128xf32, #tpu.memory_space<vmem>>, %arg4: memref<1x8x128xf32, #tpu.memory_space<vmem>>, %arg5: memref<128x128xf32, #tpu.memory_space<vmem>>, %arg6: memref<128x128xf32, #tpu.memory_space<vmem>>, %arg7: memref<128x128xf32, #tpu.memory_space<vmem>>, %arg8: memref<1x128xf32, #tpu.memory_space<vmem>>, %arg9: memref<1x128xf32, #tpu.memory_space<vmem>>, %arg10: memref<1x128xf32, #tpu.memory_space<vmem>>, %arg11: memref<1x8x128xf32, #tpu.memory_space<vmem>>, %arg12: memref<1x8x8xf32, #tpu.memory_space<vmem>>, %arg13: memref<128x8xf32, #tpu.memory_space<vmem>>, %arg14: memref<8x128xf32, #tpu.memory_space<vmem>>) attributes {dimension_semantics = [#tpu.dimension_semantics<parallel>, #tpu.dimension_semantics<arbitrary>], iteration_bounds = array<i64: 2, 1>, scalar_prefetch = 0 : i64, scratch_operands = 2 : i64, tpu.core_type = #tpu.core_type<tc>, window_params = [{transform_indices = @transform_0, window_bounds = array<i64: 1, 8, 128>}, {transform_indices = @transform_1, window_bounds = array<i64: 1, 8, 128>}, {transform_indices = @transform_2, window_bounds = array<i64: 1, 8, 128>}, {pipeline_mode = #tpu.pipeline_mode<synchronous>, transform_indices = @transform_3, window_bounds = array<i64: 128, 128>}, {pipeline_mode = #tpu.pipeline_mode<synchronous>, transform_indices = @transform_4, window_bounds = array<i64: 128, 128>}, {pipeline_mode = #tpu.pipeline_mode<synchronous>, transform_indices = @transform_5, window_bounds = array<i64: 128, 128>}, {pipeline_mode = #tpu.pipeline_mode<synchronous>, transform_indices = @transform_6, window_bounds = array<i64: 1, 128>}, {pipeline_mode = #tpu.pipeline_mode<synchronous>, transform_indices = @transform_7, window_bounds = array<i64: 1, 128>}, {pipeline_mode = #tpu.pipeline_mode<synchronous>, transform_indices = @transform_8, window_bounds = array<i64: 1, 128>}, {transform_indices = @transform_9, window_bounds = array<i64: 1, 8, 128>}, {transform_indices = @transform_10, window_bounds = array<i64: 1, 8, 8>}]} {
    %c0_i32 = arith.constant 0 : i32
    %0 = arith.cmpi eq, %arg1, %c0_i32 : i32
    %1 = arith.extui %0 : i1 to i32
    %c0_i32_0 = arith.constant 0 : i32
    %2 = arith.cmpi ne, %1, %c0_i32_0 : i32
    scf.if %2 {
      %c0_22 = arith.constant 0 : index
      %c0_23 = arith.constant 0 : index
      %c0_24 = arith.constant 0 : index
      %34 = vector.load %arg3[%c0_22, %c0_23, %c0_24] : memref<1x8x128xf32, #tpu.memory_space<vmem>>, vector<1x8x128xf32>
      %35 = vector.shape_cast %34 : vector<1x8x128xf32> to vector<8x128xf32>
      %c0_25 = arith.constant 0 : index
      %c0_26 = arith.constant 0 : index
      %36 = vector.load %arg6[%c0_25, %c0_26] : memref<128x128xf32, #tpu.memory_space<vmem>>, vector<128x128xf32>
      %cst_27 = arith.constant dense<0.000000e+00> : vector<8x128xf32>
      %37 = tpu.matmul %35, %36, %cst_27 {dimension_numbers = #tpu.dot_dimension_numbers<[1], [0], [0], [1], [0, 0, 1, 1], [], []>} : vector<8x128xf32>, vector<128x128xf32>, vector<8x128xf32> -> vector<8x128xf32>
      %c0_28 = arith.constant 0 : index
      %c0_29 = arith.constant 0 : index
      %38 = vector.load %arg9[%c0_28, %c0_29] : memref<1x128xf32, #tpu.memory_space<vmem>>, vector<1x128xf32>
      %39 = vector.broadcast %38 : vector<1x128xf32> to vector<8x128xf32>
      %40 = arith.addf %37, %39 : vector<8x128xf32>
      %c0_30 = arith.constant 0 : index
      %c0_31 = arith.constant 0 : index
      %c0_32 = arith.constant 0 : index
      %41 = vector.load %arg4[%c0_30, %c0_31, %c0_32] : memref<1x8x128xf32, #tpu.memory_space<vmem>>, vector<1x8x128xf32>
      %42 = vector.shape_cast %41 : vector<1x8x128xf32> to vector<8x128xf32>
      %c0_33 = arith.constant 0 : index
      %c0_34 = arith.constant 0 : index
      %43 = vector.load %arg7[%c0_33, %c0_34] : memref<128x128xf32, #tpu.memory_space<vmem>>, vector<128x128xf32>
      %cst_35 = arith.constant dense<0.000000e+00> : vector<8x128xf32>
      %44 = tpu.matmul %42, %43, %cst_35 {dimension_numbers = #tpu.dot_dimension_numbers<[1], [0], [0], [1], [0, 0, 1, 1], [], []>} : vector<8x128xf32>, vector<128x128xf32>, vector<8x128xf32> -> vector<8x128xf32>
      %c0_36 = arith.constant 0 : index
      %c0_37 = arith.constant 0 : index
      %45 = vector.load %arg10[%c0_36, %c0_37] : memref<1x128xf32, #tpu.memory_space<vmem>>, vector<1x128xf32>
      %46 = vector.broadcast %45 : vector<1x128xf32> to vector<8x128xf32>
      %47 = arith.addf %44, %46 : vector<8x128xf32>
      %48 = tpu.transpose %40, [1, 0] : vector<8x128xf32> -> vector<128x8xf32>
      %c0_38 = arith.constant 0 : index
      %c0_39 = arith.constant 0 : index
      %49 = vector.load %arg13[%c0_38, %c0_39] : memref<128x8xf32, #tpu.memory_space<vmem>>, vector<128x8xf32>
      tpu.vector_store %arg13[%c0_38, %c0_39], %48 {strides = array<i32>} : memref<128x8xf32, #tpu.memory_space<vmem>>, vector<128x8xf32>,
      %c0_40 = arith.constant 0 : index
      %c0_41 = arith.constant 0 : index
      %50 = vector.load %arg14[%c0_40, %c0_41] : memref<8x128xf32, #tpu.memory_space<vmem>>, vector<8x128xf32>
      tpu.vector_store %arg14[%c0_40, %c0_41], %47 {strides = array<i32>} : memref<8x128xf32, #tpu.memory_space<vmem>>, vector<8x128xf32>,
    } else {
    }
    %c0 = arith.constant 0 : index
    %c0_1 = arith.constant 0 : index
    %c0_2 = arith.constant 0 : index
    %3 = vector.load %arg2[%c0, %c0_1, %c0_2] : memref<1x8x128xf32, #tpu.memory_space<vmem>>, vector<1x8x128xf32>
    %4 = vector.shape_cast %3 : vector<1x8x128xf32> to vector<8x128xf32>
    %c0_3 = arith.constant 0 : index
    %c0_4 = arith.constant 0 : index
    %5 = vector.load %arg5[%c0_3, %c0_4] : memref<128x128xf32, #tpu.memory_space<vmem>>, vector<128x128xf32>
    %cst = arith.constant dense<0.000000e+00> : vector<8x128xf32>
    %6 = tpu.matmul %4, %5, %cst {dimension_numbers = #tpu.dot_dimension_numbers<[1], [0], [0], [1], [0, 0, 1, 1], [], []>} : vector<8x128xf32>, vector<128x128xf32>, vector<8x128xf32> -> vector<8x128xf32>
    %c0_5 = arith.constant 0 : index
    %c0_6 = arith.constant 0 : index
    %7 = vector.load %arg8[%c0_5, %c0_6] : memref<1x128xf32, #tpu.memory_space<vmem>>, vector<1x128xf32>
    %8 = vector.broadcast %7 : vector<1x128xf32> to vector<8x128xf32>
    %9 = arith.addf %6, %8 : vector<8x128xf32>
    %c0_7 = arith.constant 0 : index
    %c0_8 = arith.constant 0 : index
    %10 = vector.load %arg13[%c0_7, %c0_8] : memref<128x8xf32, #tpu.memory_space<vmem>>, vector<128x8xf32>
    %cst_9 = arith.constant dense<0.000000e+00> : vector<8x8xf32>
    %11 = tpu.matmul %9, %10, %cst_9 {dimension_numbers = #tpu.dot_dimension_numbers<[1], [0], [0], [1], [0, 0, 1, 1], [], []>} : vector<8x128xf32>, vector<128x8xf32>, vector<8x8xf32> -> vector<8x8xf32>
    %cst_10 = arith.constant dense<0xFF800000> : vector<8xf32>
    %12 = vector.multi_reduction <maximumf>, %11, %cst_10 [1] : vector<8x8xf32> to vector<8xf32>
    %13 = vector.shape_cast %12 : vector<8xf32> to vector<8x1xf32>
    %14 = vector.broadcast %13 : vector<8x1xf32> to vector<8x8xf32>
    %15 = arith.subf %11, %14 : vector<8x8xf32>
    %16 = math.exp %15 : vector<8x8xf32>
    %cst_11 = arith.constant dense<0.000000e+00> : vector<8xf32>
    %17 = vector.multi_reduction <add>, %16, %cst_11 [1] : vector<8x8xf32> to vector<8xf32>
    %18 = vector.shape_cast %17 : vector<8xf32> to vector<8x1xf32>
    %19 = tpu.reciprocal %18 {approx = true} : vector<8x1xf32> -> vector<8x1xf32>
    %20 = arith.mulf %18, %19 : vector<8x1xf32>
    %cst_12 = arith.constant 2.000000e+00 : f32
    %21 = vector.broadcast %cst_12 : f32 to vector<8x1xf32>
    %22 = arith.subf %21, %20 : vector<8x1xf32>
    %23 = arith.mulf %19, %22 : vector<8x1xf32>
    %24 = vector.broadcast %23 : vector<8x1xf32> to vector<8x8xf32>
    %25 = arith.mulf %16, %24 : vector<8x8xf32>
    %c0_13 = arith.constant 0 : index
    %c0_14 = arith.constant 0 : index
    %26 = vector.load %arg14[%c0_13, %c0_14] : memref<8x128xf32, #tpu.memory_space<vmem>>, vector<8x128xf32>
    %cst_15 = arith.constant dense<0.000000e+00> : vector<8x128xf32>
    %27 = tpu.matmul %25, %26, %cst_15 {dimension_numbers = #tpu.dot_dimension_numbers<[1], [0], [0], [1], [0, 0, 1, 1], [], []>} : vector<8x8xf32>, vector<8x128xf32>, vector<8x128xf32> -> vector<8x128xf32>
    %c0_16 = arith.constant 0 : index
    %c0_17 = arith.constant 0 : index
    %c0_18 = arith.constant 0 : index
    %28 = vector.load %arg11[%c0_16, %c0_17, %c0_18] : memref<1x8x128xf32, #tpu.memory_space<vmem>>, vector<1x8x128xf32>
    %29 = vector.shape_cast %28 : vector<1x8x128xf32> to vector<8x128xf32>
    %30 = vector.shape_cast %27 : vector<8x128xf32> to vector<1x8x128xf32>
    tpu.vector_store %arg11[%c0_16, %c0_17, %c0_18], %30 {strides = array<i32>} : memref<1x8x128xf32, #tpu.memory_space<vmem>>, vector<1x8x128xf32>,
    %c0_19 = arith.constant 0 : index
    %c0_20 = arith.constant 0 : index
    %c0_21 = arith.constant 0 : index
    %31 = vector.load %arg12[%c0_19, %c0_20, %c0_21] : memref<1x8x8xf32, #tpu.memory_space<vmem>>, vector<1x8x8xf32>
    %32 = vector.shape_cast %31 : vector<1x8x8xf32> to vector<8x8xf32>
    %33 = vector.shape_cast %25 : vector<8x8xf32> to vector<1x8x8xf32>
    tpu.vector_store %arg12[%c0_19, %c0_20, %c0_21], %33 {strides = array<i32>} : memref<1x8x8xf32, #tpu.memory_space<vmem>>, vector<1x8x8xf32>,
    return
  }
  func.func @transform_0(%arg0: i32, %arg1: i32) -> (i32, i32, i32) {
    %c0_i32 = arith.constant 0 : i32
    %c0_i32_0 = arith.constant 0 : i32
    return %arg0, %arg1, %c0_i32 : i32, i32, i32
  }
  func.func @transform_1(%arg0: i32, %arg1: i32) -> (i32, i32, i32) {
    %c0_i32 = arith.constant 0 : i32
    %c0_i32_0 = arith.constant 0 : i32
    %c0_i32_1 = arith.constant 0 : i32
    return %arg0, %c0_i32, %c0_i32_0 : i32, i32, i32
  }
  func.func @transform_2(%arg0: i32, %arg1: i32) -> (i32, i32, i32) {
    %c0_i32 = arith.constant 0 : i32
    %c0_i32_0 = arith.constant 0 : i32
    %c0_i32_1 = arith.constant 0 : i32
    return %arg0, %c0_i32, %c0_i32_0 : i32, i32, i32
  }
  func.func @transform_3(%arg0: i32, %arg1: i32) -> (i32, i32) {
    %c0_i32 = arith.constant 0 : i32
    %c0_i32_0 = arith.constant 0 : i32
    %c0_i32_1 = arith.constant 0 : i32
    return %c0_i32, %c0_i32_0 : i32, i32
  }
  func.func @transform_4(%arg0: i32, %arg1: i32) -> (i32, i32) {
    %c0_i32 = arith.constant 0 : i32
    %c0_i32_0 = arith.constant 0 : i32
    %c0_i32_1 = arith.constant 0 : i32
    return %c0_i32, %c0_i32_0 : i32, i32
  }
  func.func @transform_5(%arg0: i32, %arg1: i32) -> (i32, i32) {
    %c0_i32 = arith.constant 0 : i32
    %c0_i32_0 = arith.constant 0 : i32
    %c0_i32_1 = arith.constant 0 : i32
    return %c0_i32, %c0_i32_0 : i32, i32
  }
  func.func @transform_6(%arg0: i32, %arg1: i32) -> (i32, i32) {
    %c0_i32 = arith.constant 0 : i32
    %c0_i32_0 = arith.constant 0 : i32
    %c0_i32_1 = arith.constant 0 : i32
    return %c0_i32, %c0_i32_0 : i32, i32
  }
  func.func @transform_7(%arg0: i32, %arg1: i32) -> (i32, i32) {
    %c0_i32 = arith.constant 0 : i32
    %c0_i32_0 = arith.constant 0 : i32
    %c0_i32_1 = arith.constant 0 : i32
    return %c0_i32, %c0_i32_0 : i32, i32
  }
  func.func @transform_8(%arg0: i32, %arg1: i32) -> (i32, i32) {
    %c0_i32 = arith.constant 0 : i32
    %c0_i32_0 = arith.constant 0 : i32
    %c0_i32_1 = arith.constant 0 : i32
    return %c0_i32, %c0_i32_0 : i32, i32
  }
  func.func @transform_9(%arg0: i32, %arg1: i32) -> (i32, i32, i32) {
    %c0_i32 = arith.constant 0 : i32
    %c0_i32_0 = arith.constant 0 : i32
    return %arg0, %arg1, %c0_i32 : i32, i32, i32
  }
  func.func @transform_10(%arg0: i32, %arg1: i32) -> (i32, i32, i32) {
    %c0_i32 = arith.constant 0 : i32
    %c0_i32_0 = arith.constant 0 : i32
    return %arg0, %arg1, %c0_i32 : i32, i32, i32
  }
}

</mosaic_0001>

<llo_original>
// kernel: _lambda_.1
$region0: #{_lambda_.1}
  #allocation0 [shape = 'u32[]', space=smem, size = 0x4, offset = 0x4, fixed_abs, tag = 'smem constant byte address 0x4 - core index']
  #allocation1 [shape = 'u32[144,128]{1,0:T(1,128)}', space=vmem, size = 0x12000, scoped, tag = 'internal scratch']
  #allocation2 [shape = 'f32[128,8]{1,0:T(8,128)}', space=vmem, size = 0x10000, scoped, tag = 'scratch operand']
  #allocation3 [shape = 'f32[8,128]{1,0:T(8,128)}', space=vmem, size = 0x1000, scoped, tag = 'scratch operand']
  %s0 = inlined_call_operand.vmem [shape: f32[2,8,128], index: 0, kind: input, shape index: {}]
  %s1 = inlined_call_operand.vmem [shape: f32[2,8,128], index: 1, kind: input, shape index: {}]
  %s2 = inlined_call_operand.vmem [shape: f32[2,8,128], index: 2, kind: input, shape index: {}]
  %s3 = inlined_call_operand.vmem [shape: f32[128,128], index: 3, kind: input, shape index: {}]
  %s4 = inlined_call_operand.vmem [shape: f32[128,128], index: 4, kind: input, shape index: {}]
  %s5 = inlined_call_operand.vmem [shape: f32[128,128], index: 5, kind: input, shape index: {}]
  %s6 = inlined_call_operand.vmem [shape: f32[1,128], index: 6, kind: input, shape index: {}]
  %s7 = inlined_call_operand.vmem [shape: f32[1,128], index: 7, kind: input, shape index: {}]
  %s8 = inlined_call_operand.vmem [shape: f32[1,128], index: 8, kind: input, shape index: {}]
  %s9 = inlined_call_operand.vmem [shape: f32[2,8,128], index: 9, kind: output, shape index: {0}]
  %s10 = inlined_call_operand.hbm [shape: f32[2,8,8], index: 10, kind: output, shape index: {1}]
  %11 = xla_tuple %s9, %s10
  %s12 = sld [smem:[#allocation0]]
  $region81: #{_lambda_.1} parent=0
    _
  %s14 = ssub.s32 1, %s12
  %s15 = scalar_select 0, %s14, %s12
  $region1: #{_lambda_.1} parent=0
    #allocation4 [shape = 'u8[8192]{0}', space=vmem, size = 0x2000, scoped, tag = 'output window, operand 1']
    #allocation5 [shape = 's32[2]{0}', space=sflag, size = 0x8, scoped, tag = 'scoped memory for _lambda_.1']
    %16 = vsyncpa [#allocation5], 0
    %s17 = scalar_lea.sflag [#allocation5], 1
    %18 = vsyncpa %s17, 0
    loop: start=0, step=1, limit=4
    $region2: #{_lambda_.1} parent=1 // loop_pre_header
      _
    $region3: #{_lambda_.1} parent=1 // loop_header
      %s20 = sphi 0, %s24
      %p21 = scmp.ge.s32.totalorder %s20, 4
      %s27 = sphi 0, %s39
      %s28 = sphi 0, %s35
      %s29 = sphi 0, %s27
      %s30 = sphi 0, %s28
      %s31 = sphi 0, %s29
      %s32 = sphi 0, %s30
      %s44 = sphi 0, %s46
      %s47 = sphi 0, %s44
      %s48 = sphi 0, %s47
      %s64 = sphi 0, %s48
      %s70 = sphi 0, %s72
      %s73 = sphi 0, %s70
      %s74 = sphi 0, %s73
      %s90 = sphi 0, %s74
      %s96 = sphi 0, %s98
      %s99 = sphi 0, %s96
      %s100 = sphi 0, %s99
      %s116 = sphi 0, %s100
      %s120 = sphi 0, %s120
      %s122 = sphi 0, %s120
      %s123 = sphi 0, %s122
      %s137 = sphi 0, %s123
      %s141 = sphi 0, %s141
      %s143 = sphi 0, %s141
      %s144 = sphi 0, %s143
      %s158 = sphi 0, %s144
      %s162 = sphi 0, %s162
      %s164 = sphi 0, %s162
      %s165 = sphi 0, %s164
      %s179 = sphi 0, %s165
      %s183 = sphi 0, %s183
      %s185 = sphi 0, %s183
      %s186 = sphi 0, %s185
      %s200 = sphi 0, %s186
      %s204 = sphi 0, %s204
      %s206 = sphi 0, %s204
      %s207 = sphi 0, %s206
      %s221 = sphi 0, %s207
      %s225 = sphi 0, %s225
      %s227 = sphi 0, %s225
      %s228 = sphi 0, %s227
      %s242 = sphi 0, %s228
      %s250 = sphi 0, %s252
      %s253 = sphi 0, %s250
      %s254 = sphi 0, %s253
      %s270 = sphi 0, %s254
      %s278 = sphi 0, %s280
      %s281 = sphi 0, %s278
      %s282 = sphi 0, %s281
      %s298 = sphi 0, %s282
    $region4: #{_lambda_.1} parent=1 // loop_header_branch
      %23 = sbr.rel (%p21) target = $region8
    $region5: #{_lambda_.1} parent=1 // loop_body
      %s25 = ssub.s32 %s20, 1
      %s26 = ssub.s32 %s20, 2
      %s33 = sadd.s32 1, %s28
      %p34 = scmp.ge.s32.totalorder %s33, 1
      %s35 = scalar_select %p34, 0, %s33
      %s36 = sadd.s32 1, %s27
      %s37 = scalar_select %p34, %s36, %s27
      %p38 = scmp.ge.s32.totalorder %s37, 2
      %s39 = scalar_select %p38, 0, %s37
      %s40 = ssub.s32 %s27, %s39
      %s41 = ssub.s32 %s28, %s35
      %s42 = sor.u32 %s40, %s41
      %p43 = scmp.eq.s32.totalorder %s42, 0
      %s45 = sadd.s32 %s44, 1
      %s46 = scalar_select %p43, %s44, %s45
      %p49 = pneg %p43
      %p50 = scmp.eq.s32.totalorder %s20, 1
      %p51 = por %p49, %p50
      %p52 = scmp.ne.s32.totalorder %s44, %s47
      %p53 = scmp.eq.s32.totalorder %s20, 0
      %p54 = por %p52, %p53
      %p55 = scmp.ne.s32.totalorder %s44, %s47
      %p56 = scmp.eq.s32.totalorder %s25, 1
      %p57 = por %p55, %p56
      %p58 = scmp.ne.s32.totalorder %s47, %s48
      %p59 = scmp.eq.s32.totalorder %s25, 0
      %p60 = por %p58, %p59
      %p61 = scmp.ne.s32.totalorder %s47, %s48
      %p62 = scmp.eq.s32.totalorder %s26, 1
      %p63 = por %p61, %p62
      %p65 = scmp.ne.s32.totalorder %s48, %s64
      %p66 = scmp.eq.s32.totalorder %s26, 0
      %p67 = por %p65, %p66
      %s68 = ssub.s32 %s27, %s39
      %p69 = scmp.eq.s32.totalorder %s68, 0
      %s71 = sadd.s32 %s70, 1
      %s72 = scalar_select %p69, %s70, %s71
      %p75 = pneg %p69
      %p76 = scmp.eq.s32.totalorder %s20, 1
      %p77 = por %p75, %p76
      %p78 = scmp.ne.s32.totalorder %s70, %s73
      %p79 = scmp.eq.s32.totalorder %s20, 0
      %p80 = por %p78, %p79
      %p81 = scmp.ne.s32.totalorder %s70, %s73
      %p82 = scmp.eq.s32.totalorder %s25, 1
      %p83 = por %p81, %p82
      %p84 = scmp.ne.s32.totalorder %s73, %s74
      %p85 = scmp.eq.s32.totalorder %s25, 0
      %p86 = por %p84, %p85
      %p87 = scmp.ne.s32.totalorder %s73, %s74
      %p88 = scmp.eq.s32.totalorder %s26, 1
      %p89 = por %p87, %p88
      %p91 = scmp.ne.s32.totalorder %s74, %s90
      %p92 = scmp.eq.s32.totalorder %s26, 0
      %p93 = por %p91, %p92
      %s94 = ssub.s32 %s27, %s39
      %p95 = scmp.eq.s32.totalorder %s94, 0
      %s97 = sadd.s32 %s96, 1
      %s98 = scalar_select %p95, %s96, %s97
      %p101 = pneg %p95
      %p102 = scmp.eq.s32.totalorder %s20, 1
      %p103 = por %p101, %p102
      %p104 = scmp.ne.s32.totalorder %s96, %s99
      %p105 = scmp.eq.s32.totalorder %s20, 0
      %p106 = por %p104, %p105
      %p107 = scmp.ne.s32.totalorder %s96, %s99
      %p108 = scmp.eq.s32.totalorder %s25, 1
      %p109 = por %p107, %p108
      %p110 = scmp.ne.s32.totalorder %s99, %s100
      %p111 = scmp.eq.s32.totalorder %s25, 0
      %p112 = por %p110, %p111
      %p113 = scmp.ne.s32.totalorder %s99, %s100
      %p114 = scmp.eq.s32.totalorder %s26, 1
      %p115 = por %p113, %p114
      %p117 = scmp.ne.s32.totalorder %s100, %s116
      %p118 = scmp.eq.s32.totalorder %s26, 0
      %p119 = por %p117, %p118
      %s121 = sadd.s32 %s120, 1
      %p124 = scmp.eq.s32.totalorder %s20, 1
      %p125 = scmp.ne.s32.totalorder %s120, %s122
      %p126 = scmp.eq.s32.totalorder %s20, 0
      %p127 = por %p125, %p126
      %p128 = scmp.ne.s32.totalorder %s120, %s122
      %p129 = scmp.eq.s32.totalorder %s25, 1
      %p130 = por %p128, %p129
      %p131 = scmp.ne.s32.totalorder %s122, %s123
      %p132 = scmp.eq.s32.totalorder %s25, 0
      %p133 = por %p131, %p132
      %p134 = scmp.ne.s32.totalorder %s122, %s123
      %p135 = scmp.eq.s32.totalorder %s26, 1
      %p136 = por %p134, %p135
      %p138 = scmp.ne.s32.totalorder %s123, %s137
      %p139 = scmp.eq.s32.totalorder %s26, 0
      %p140 = por %p138, %p139
      %s142 = sadd.s32 %s141, 1
      %p145 = scmp.eq.s32.totalorder %s20, 1
      %p146 = scmp.ne.s32.totalorder %s141, %s143
      %p147 = scmp.eq.s32.totalorder %s20, 0
      %p148 = por %p146, %p147
      %p149 = scmp.ne.s32.totalorder %s141, %s143
      %p150 = scmp.eq.s32.totalorder %s25, 1
      %p151 = por %p149, %p150
      %p152 = scmp.ne.s32.totalorder %s143, %s144
      %p153 = scmp.eq.s32.totalorder %s25, 0
      %p154 = por %p152, %p153
      %p155 = scmp.ne.s32.totalorder %s143, %s144
      %p156 = scmp.eq.s32.totalorder %s26, 1
      %p157 = por %p155, %p156
      %p159 = scmp.ne.s32.totalorder %s144, %s158
      %p160 = scmp.eq.s32.totalorder %s26, 0
      %p161 = por %p159, %p160
      %s163 = sadd.s32 %s162, 1
      %p166 = scmp.eq.s32.totalorder %s20, 1
      %p167 = scmp.ne.s32.totalorder %s162, %s164
      %p168 = scmp.eq.s32.totalorder %s20, 0
      %p169 = por %p167, %p168
      %p170 = scmp.ne.s32.totalorder %s162, %s164
      %p171 = scmp.eq.s32.totalorder %s25, 1
      %p172 = por %p170, %p171
      %p173 = scmp.ne.s32.totalorder %s164, %s165
      %p174 = scmp.eq.s32.totalorder %s25, 0
      %p175 = por %p173, %p174
      %p176 = scmp.ne.s32.totalorder %s164, %s165
      %p177 = scmp.eq.s32.totalorder %s26, 1
      %p178 = por %p176, %p177
      %p180 = scmp.ne.s32.totalorder %s165, %s179
      %p181 = scmp.eq.s32.totalorder %s26, 0
      %p182 = por %p180, %p181
      %s184 = sadd.s32 %s183, 1
      %p187 = scmp.eq.s32.totalorder %s20, 1
      %p188 = scmp.ne.s32.totalorder %s183, %s185
      %p189 = scmp.eq.s32.totalorder %s20, 0
      %p190 = por %p188, %p189
      %p191 = scmp.ne.s32.totalorder %s183, %s185
      %p192 = scmp.eq.s32.totalorder %s25, 1
      %p193 = por %p191, %p192
      %p194 = scmp.ne.s32.totalorder %s185, %s186
      %p195 = scmp.eq.s32.totalorder %s25, 0
      %p196 = por %p194, %p195
      %p197 = scmp.ne.s32.totalorder %s185, %s186
      %p198 = scmp.eq.s32.totalorder %s26, 1
      %p199 = por %p197, %p198
      %p201 = scmp.ne.s32.totalorder %s186, %s200
      %p202 = scmp.eq.s32.totalorder %s26, 0
      %p203 = por %p201, %p202
      %s205 = sadd.s32 %s204, 1
      %p208 = scmp.eq.s32.totalorder %s20, 1
      %p209 = scmp.ne.s32.totalorder %s204, %s206
      %p210 = scmp.eq.s32.totalorder %s20, 0
      %p211 = por %p209, %p210
      %p212 = scmp.ne.s32.totalorder %s204, %s206
      %p213 = scmp.eq.s32.totalorder %s25, 1
      %p214 = por %p212, %p213
      %p215 = scmp.ne.s32.totalorder %s206, %s207
      %p216 = scmp.eq.s32.totalorder %s25, 0
      %p217 = por %p215, %p216
      %p218 = scmp.ne.s32.totalorder %s206, %s207
      %p219 = scmp.eq.s32.totalorder %s26, 1
      %p220 = por %p218, %p219
      %p222 = scmp.ne.s32.totalorder %s207, %s221
      %p223 = scmp.eq.s32.totalorder %s26, 0
      %p224 = por %p222, %p223
      %s226 = sadd.s32 %s225, 1
      %p229 = scmp.eq.s32.totalorder %s20, 1
      %p230 = scmp.ne.s32.totalorder %s225, %s227
      %p231 = scmp.eq.s32.totalorder %s20, 0
      %p232 = por %p230, %p231
      %p233 = scmp.ne.s32.totalorder %s225, %s227
      %p234 = scmp.eq.s32.totalorder %s25, 1
      %p235 = por %p233, %p234
      %p236 = scmp.ne.s32.totalorder %s227, %s228
      %p237 = scmp.eq.s32.totalorder %s25, 0
      %p238 = por %p236, %p237
      %p239 = scmp.ne.s32.totalorder %s227, %s228
      %p240 = scmp.eq.s32.totalorder %s26, 1
      %p241 = por %p239, %p240
      %p243 = scmp.ne.s32.totalorder %s228, %s242
      %p244 = scmp.eq.s32.totalorder %s26, 0
      %p245 = por %p243, %p244
      %s246 = ssub.s32 %s27, %s39
      %s247 = ssub.s32 %s28, %s35
      %s248 = sor.u32 %s246, %s247
      %p249 = scmp.eq.s32.totalorder %s248, 0
      %s251 = sadd.s32 %s250, 1
      %s252 = scalar_select %p249, %s250, %s251
      %p255 = pneg %p249
      %p256 = scmp.eq.s32.totalorder %s20, 1
      %p257 = por %p255, %p256
      %p258 = scmp.ne.s32.totalorder %s250, %s253
      %p259 = scmp.eq.s32.totalorder %s20, 0
      %p260 = por %p258, %p259
      %p261 = scmp.ne.s32.totalorder %s250, %s253
      %p262 = scmp.eq.s32.totalorder %s25, 1
      %p263 = por %p261, %p262
      %p264 = scmp.ne.s32.totalorder %s253, %s254
      %p265 = scmp.eq.s32.totalorder %s25, 0
      %p266 = por %p264, %p265
      %p267 = scmp.ne.s32.totalorder %s253, %s254
      %p268 = scmp.eq.s32.totalorder %s26, 1
      %p269 = por %p267, %p268
      %p271 = scmp.ne.s32.totalorder %s254, %s270
      %p272 = scmp.eq.s32.totalorder %s26, 0
      %p273 = por %p271, %p272
      %s274 = ssub.s32 %s27, %s39
      %s275 = ssub.s32 %s28, %s35
      %s276 = sor.u32 %s274, %s275
      %p277 = scmp.eq.s32.totalorder %s276, 0
      %s279 = sadd.s32 %s278, 1
      %s280 = scalar_select %p277, %s278, %s279
      %p283 = pneg %p277
      %p284 = scmp.eq.s32.totalorder %s20, 1
      %p285 = por %p283, %p284
      %p286 = scmp.ne.s32.totalorder %s278, %s281
      %p287 = scmp.eq.s32.totalorder %s20, 0
      %p288 = por %p286, %p287
      %p289 = scmp.ne.s32.totalorder %s278, %s281
      %p290 = scmp.eq.s32.totalorder %s25, 1
      %p291 = por %p289, %p290
      %p292 = scmp.ne.s32.totalorder %s281, %s282
      %p293 = scmp.eq.s32.totalorder %s25, 0
      %p294 = por %p292, %p293
      %p295 = scmp.ne.s32.totalorder %s281, %s282
      %p296 = scmp.eq.s32.totalorder %s26, 1
      %p297 = por %p295, %p296
      %p299 = scmp.ne.s32.totalorder %s282, %s298
      %p300 = scmp.eq.s32.totalorder %s26, 0
      %p301 = por %p299, %p300
      %p302 = scmp.le.s32.totalorder 1, %s20
      %p303 = scmp.lt.s32.totalorder %s20, 3
      %p304 = pnand %p302, %p303
      %p305 = pneg %p304
      // Predicated region
      $region9: #{_lambda_.1} parent=5 // pred_check
        _
      $region10: #{_lambda_.1} parent=5 // pred_check_branch
        %307 = sbr.rel (%p304) target = $region12
      $region11: #{_lambda_.1} parent=5 // pred_region
        %s308 = ssub.s32 %s20, 1
        // Predicated region
        $region13: #{_lambda_.1} parent=11 // pred_check
          %p309 = pneg %p133
        $region14: #{_lambda_.1} parent=11 // pred_check_branch
          %311 = sbr.rel (%p309) target = $region16
        $region15: #{_lambda_.1} parent=11 // pred_region
          _
        $region16: #{_lambda_.1} parent=11 // pred_fallthru
          _
        // Predicated region
        $region17: #{_lambda_.1} parent=11 // pred_check
          %p312 = pneg %p154
        $region18: #{_lambda_.1} parent=11 // pred_check_branch
          %314 = sbr.rel (%p312) target = $region20
        $region19: #{_lambda_.1} parent=11 // pred_region
          _
        $region20: #{_lambda_.1} parent=11 // pred_fallthru
          _
        // Predicated region
        $region21: #{_lambda_.1} parent=11 // pred_check
          %p315 = pneg %p175
        $region22: #{_lambda_.1} parent=11 // pred_check_branch
          %317 = sbr.rel (%p315) target = $region24
        $region23: #{_lambda_.1} parent=11 // pred_region
          _
        $region24: #{_lambda_.1} parent=11 // pred_fallthru
          _
        // Predicated region
        $region25: #{_lambda_.1} parent=11 // pred_check
          %p318 = pneg %p196
        $region26: #{_lambda_.1} parent=11 // pred_check_branch
          %320 = sbr.rel (%p318) target = $region28
        $region27: #{_lambda_.1} parent=11 // pred_region
          _
        $region28: #{_lambda_.1} parent=11 // pred_fallthru
          _
        // Predicated region
        $region29: #{_lambda_.1} parent=11 // pred_check
          %p321 = pneg %p217
        $region30: #{_lambda_.1} parent=11 // pred_check_branch
          %323 = sbr.rel (%p321) target = $region32
        $region31: #{_lambda_.1} parent=11 // pred_region
          _
        $region32: #{_lambda_.1} parent=11 // pred_fallthru
          _
        // Predicated region
        $region33: #{_lambda_.1} parent=11 // pred_check
          %p324 = pneg %p238
        $region34: #{_lambda_.1} parent=11 // pred_check_branch
          %326 = sbr.rel (%p324) target = $region36
        $region35: #{_lambda_.1} parent=11 // pred_region
          _
        $region36: #{_lambda_.1} parent=11 // pred_fallthru
          _
      $region12: #{_lambda_.1} parent=5 // pred_fallthru
        _
      %p327 = scmp.lt.s32.totalorder %s20, 2
      // Predicated region
      $region37: #{_lambda_.1} parent=5 // pred_check
        %p328 = pneg %p327
      $region38: #{_lambda_.1} parent=5 // pred_check_branch
        %330 = sbr.rel (%p328) target = $region40
      $region39: #{_lambda_.1} parent=5 // pred_region
        // Predicated region
        $region41: #{_lambda_.1} parent=39 // pred_check
          %p331 = pneg %p54
        $region42: #{_lambda_.1} parent=39 // pred_check_branch
          %333 = sbr.rel (%p331) target = $region44
        $region43: #{_lambda_.1} parent=39 // pred_region
          %p334 = scmp.lt.s32.totalorder %s27, 1
          %s335 = scalar_select %p334, %s27, 1
          %p336 = scmp.lt.s32.totalorder %s28, 0
          %s337 = scalar_select %p336, %s28, 0
          %s338 = sadd.s32 %s337, %s335
          %s339 = smul.addr %s338, 8
          %s340 = scalar_lea.vmem %s0, %s339
        $region44: #{_lambda_.1} parent=39 // pred_fallthru
          _
        // Predicated region
        $region45: #{_lambda_.1} parent=39 // pred_check
          %p341 = pneg %p80
        $region46: #{_lambda_.1} parent=39 // pred_check_branch
          %343 = sbr.rel (%p341) target = $region48
        $region47: #{_lambda_.1} parent=39 // pred_region
          %p344 = scmp.lt.s32.totalorder %s27, 1
          %s345 = scalar_select %p344, %s27, 1
          %s346 = smul.addr %s345, 8
          %s347 = scalar_lea.vmem %s1, %s346
        $region48: #{_lambda_.1} parent=39 // pred_fallthru
          _
        // Predicated region
        $region49: #{_lambda_.1} parent=39 // pred_check
          %p348 = pneg %p106
        $region50: #{_lambda_.1} parent=39 // pred_check_branch
          %350 = sbr.rel (%p348) target = $region52
        $region51: #{_lambda_.1} parent=39 // pred_region
          %p351 = scmp.lt.s32.totalorder %s27, 1
          %s352 = scalar_select %p351, %s27, 1
          %s353 = smul.addr %s352, 8
          %s354 = scalar_lea.vmem %s2, %s353
        $region52: #{_lambda_.1} parent=39 // pred_fallthru
          _
      $region40: #{_lambda_.1} parent=5 // pred_fallthru
        _
      %p355 = scmp.le.s32.totalorder 1, %s20
      %p356 = scmp.lt.s32.totalorder %s20, 3
      %p357 = pnand %p355, %p356
      %p358 = pneg %p357
      // Predicated region
      $region53: #{_lambda_.1} parent=5 // pred_check
        _
      $region54: #{_lambda_.1} parent=5 // pred_check_branch
        %360 = sbr.rel (%p357) target = $region56
      $region55: #{_lambda_.1} parent=5 // pred_region
        %s361 = ssub.s32 %s20, 1
        %p362 = scmp.lt.s32.totalorder %s29, 1
        %s363 = scalar_select %p362, %s29, 1
        %p364 = scmp.lt.s32.totalorder %s30, 0
        %s365 = scalar_select %p364, %s30, 0
        %s366 = sadd.s32 %s365, %s363
        %s367 = smul.addr %s366, 8
        %s368 = scalar_lea.vmem %s0, %s367
        %p369 = pneg %p60
        %p370 = pneg %p57
        %p371 = scmp.lt.s32.totalorder %s29, 1
        %s372 = scalar_select %p371, %s29, 1
        %s373 = smul.addr %s372, 8
        %s374 = scalar_lea.vmem %s1, %s373
        %p375 = pneg %p86
        %p376 = pneg %p83
        %p377 = scmp.lt.s32.totalorder %s29, 1
        %s378 = scalar_select %p377, %s29, 1
        %s379 = smul.addr %s378, 8
        %s380 = scalar_lea.vmem %s2, %s379
        %p381 = pneg %p112
        %p382 = pneg %p109
        %p383 = pneg %p133
        %p384 = pneg %p130
        %p385 = pneg %p154
        %p386 = pneg %p151
        %p387 = pneg %p175
        %p388 = pneg %p172
        %p389 = pneg %p196
        %p390 = pneg %p193
        %p391 = pneg %p217
        %p392 = pneg %p214
        %p393 = pneg %p238
        %p394 = pneg %p235
        %p395 = pneg %p266
        %p396 = pneg %p263
        %p397 = scmp.lt.s32.totalorder %s29, 1
        %s398 = scalar_select %p397, %s29, 1
        %p399 = scmp.lt.s32.totalorder %s30, 0
        %s400 = scalar_select %p399, %s30, 0
        %s401 = sadd.s32 %s400, %s398
        %s402 = smul.addr %s401, 8
        %s403 = scalar_lea.vmem %s9, %s402
        %p404 = pneg %p294
        %p405 = pneg %p291
        %s406 = sand.u32 %s281, 1
        %s407 = scalar_lea.sflag [#allocation5], %s406
        %s408 = sand.u32 %s281, 1
        %s409 = smul.addr %s408, 8
        %s410 = scalar_lea.vmem [#allocation4], %s409
        %p411 = scmp.lt.s32.totalorder %s29, 1
        %s412 = scalar_select %p411, %s29, 1
        %p413 = scmp.lt.s32.totalorder %s30, 0
        %s414 = scalar_select %p413, %s30, 0
        %s415 = sadd.s32 %s414, %s412
        %s416 = smul.addr %s415, 8
        %s417 = scalar_lea.vmem %s0, %s416
        %p418 = scmp.lt.s32.totalorder %s29, 1
        %s419 = scalar_select %p418, %s29, 1
        %s420 = smul.addr %s419, 8
        %s421 = scalar_lea.vmem %s1, %s420
        %p422 = scmp.lt.s32.totalorder %s29, 1
        %s423 = scalar_select %p422, %s29, 1
        %s424 = smul.addr %s423, 8
        %s425 = scalar_lea.vmem %s2, %s424
        %p426 = scmp.lt.s32.totalorder %s29, 1
        %s427 = scalar_select %p426, %s29, 1
        %p428 = scmp.lt.s32.totalorder %s30, 0
        %s429 = scalar_select %p428, %s30, 0
        %s430 = sadd.s32 %s429, %s427
        %s431 = smul.addr %s430, 8
        %s432 = scalar_lea.vmem %s9, %s431
        %p433 = scmp.eq.s32.totalorder %s30, 0
        // Predicated region
        $region57: #{_lambda_.1} parent=55 // pred_check
          %p434 = pneg %p433
        $region58: #{_lambda_.1} parent=55 // pred_check_branch
          %436 = sbr.rel (%p434) target = $region60
        $region59: #{_lambda_.1} parent=55 // pred_region
          %v437 = vld [vmem:[%s421] sm:$0xff]
          %v438 = vld [vmem:[%s4] sm:$0xff]
          %v439 = vld [vmem:[%s4 + $0x8] sm:$0xff]
          %v440 = vld [vmem:[%s4 + $0x10] sm:$0xff]
          %v441 = vld [vmem:[%s4 + $0x18] sm:$0xff]
          %v442 = vld [vmem:[%s4 + $0x20] sm:$0xff]
          %v443 = vld [vmem:[%s4 + $0x28] sm:$0xff]
          %v444 = vld [vmem:[%s4 + $0x30] sm:$0xff]
          %v445 = vld [vmem:[%s4 + $0x38] sm:$0xff]
          %v446 = vld [vmem:[%s4 + $0x40] sm:$0xff]
          %v447 = vld [vmem:[%s4 + $0x48] sm:$0xff]
          %v448 = vld [vmem:[%s4 + $0x50] sm:$0xff]
          %v449 = vld [vmem:[%s4 + $0x58] sm:$0xff]
          %v450 = vld [vmem:[%s4 + $0x60] sm:$0xff]
          %v451 = vld [vmem:[%s4 + $0x68] sm:$0xff]
          %v452 = vld [vmem:[%s4 + $0x70] sm:$0xff]
          %v453 = vld [vmem:[%s4 + $0x78] sm:$0xff]
          %v454 = vld [vmem:[%s7] sm:$0x1]
          %v456 = vlaneseq
          %v457 = vshrl.u32 %v456, 7
          %v458 = vsub.s32 0, %v457
          %v459 = vrot.slane %v454, %v458
          %461 = vmatprep.subr.mxu0 0.0
          %462 = vmatpush1.msra.mxu0 %v438
          %463 = vmatprep.subr.mxu0 0.0
          %464 = vmatpush1.msra.mxu0 %v439
          %465 = vmatprep.subr.mxu0 0.0
          %466 = vmatpush1.msra.mxu0 %v440
          %467 = vmatprep.subr.mxu0 0.0
          %468 = vmatpush1.msra.mxu0 %v441
          %469 = vmatprep.subr.mxu0 0.0
          %470 = vmatpush1.msra.mxu0 %v442
          %471 = vmatprep.subr.mxu0 0.0
          %472 = vmatpush1.msra.mxu0 %v443
          %473 = vmatprep.subr.mxu0 0.0
          %474 = vmatpush1.msra.mxu0 %v444
          %475 = vmatprep.subr.mxu0 0.0
          %476 = vmatpush1.msra.mxu0 %v445
          %477 = vmatprep.subr.mxu0 0.0
          %478 = vmatpush1.msra.mxu0 %v446
          %479 = vmatprep.subr.mxu0 0.0
          %480 = vmatpush1.msra.mxu0 %v447
          %481 = vmatprep.subr.mxu0 0.0
          %482 = vmatpush1.msra.mxu0 %v448
          %483 = vmatprep.subr.mxu0 0.0
          %484 = vmatpush1.msra.mxu0 %v449
          %485 = vmatprep.subr.mxu0 0.0
          %486 = vmatpush1.msra.mxu0 %v450
          %487 = vmatprep.subr.mxu0 0.0
          %488 = vmatpush1.msra.mxu0 %v451
          %489 = vmatprep.subr.mxu0 0.0
          %490 = vmatpush1.msra.mxu0 %v452
          %491 = vmatprep.subr.mxu0 0.0
          %492 = vmatpush1.msra.mxu0 %v453
          %493 = vmatprep.subr.mxu0 0.0
          %494 = vmatpush1.msra.mxu0 0.0
          %495 = vmatprep.subr.mxu0 0.0
          %496 = vmatpush1.msra.mxu0 0.0
          %497 = vmatprep.subr.mxu0 0.0
          %498 = vmatpush1.msra.mxu0 0.0
          %499 = vmatprep.subr.mxu0 0.0
          %500 = vmatpush1.msra.mxu0 0.0
          %501 = vmatprep.subr.mxu0 0.0
          %502 = vmatpush1.msra.mxu0 0.0
          %503 = vmatprep.subr.mxu0 0.0
          %504 = vmatpush1.msra.mxu0 0.0
          %505 = vmatprep.subr.mxu0 0.0
          %506 = vmatpush1.msra.mxu0 0.0
          %507 = vmatprep.subr.mxu0 0.0
          %508 = vmatpush1.msra.mxu0 0.0
          %509 = vmatprep.subr.mxu0 0.0
          %510 = vmatpush1.msra.mxu0 0.0
          %511 = vmatprep.subr.mxu0 0.0
          %512 = vmatpush1.msra.mxu0 0.0
          %513 = vmatprep.subr.mxu0 0.0
          %514 = vmatpush1.msra.mxu0 0.0
          %515 = vmatprep.subr.mxu0 0.0
          %516 = vmatpush1.msra.mxu0 0.0
          %517 = vmatprep.subr.mxu0 0.0
          %518 = vmatpush1.msra.mxu0 0.0
          %519 = vmatprep.subr.mxu0 0.0
          %520 = vmatpush1.msra.mxu0 0.0
          %521 = vmatprep.subr.mxu0 0.0
          %522 = vmatpush1.msra.mxu0 0.0
          %523 = vmatprep.subr.mxu0 0.0
          %524 = vmatpush1.msra.mxu0 0.0
          %525 = vmatprep.mubr.f32.mxu0 0.0
          %526 = vmatmul.mubr.f32.gmra.mrb[0].mxu0 %v437
          %v527 = vpop.f32.mrb[0].mxu0
          %v528 = vadd.f32 %v459, %v527
          %v529 = vpop.f32.mrb[0].mxu0
          %530 = vdwg.mxu0
          %v531 = vld [vmem:[%s425] sm:$0xff]
          %v532 = vld [vmem:[%s5] sm:$0xff]
          %v533 = vld [vmem:[%s5 + $0x8] sm:$0xff]
          %v534 = vld [vmem:[%s5 + $0x10] sm:$0xff]
          %v535 = vld [vmem:[%s5 + $0x18] sm:$0xff]
          %v536 = vld [vmem:[%s5 + $0x20] sm:$0xff]
          %v537 = vld [vmem:[%s5 + $0x28] sm:$0xff]
          %v538 = vld [vmem:[%s5 + $0x30] sm:$0xff]
          %v539 = vld [vmem:[%s5 + $0x38] sm:$0xff]
          %v540 = vld [vmem:[%s5 + $0x40] sm:$0xff]
          %v541 = vld [vmem:[%s5 + $0x48] sm:$0xff]
          %v542 = vld [vmem:[%s5 + $0x50] sm:$0xff]
          %v543 = vld [vmem:[%s5 + $0x58] sm:$0xff]
          %v544 = vld [vmem:[%s5 + $0x60] sm:$0xff]
          %v545 = vld [vmem:[%s5 + $0x68] sm:$0xff]
          %v546 = vld [vmem:[%s5 + $0x70] sm:$0xff]
          %v547 = vld [vmem:[%s5 + $0x78] sm:$0xff]
          %v548 = vld [vmem:[%s8] sm:$0x1]
          %v550 = vlaneseq
          %v551 = vshrl.u32 %v550, 7
          %v552 = vsub.s32 0, %v551
          %v553 = vrot.slane %v548, %v552
          %555 = vmatprep.subr.mxu0 0.0
          %556 = vmatpush1.msra.mxu0 %v532
          %557 = vmatprep.subr.mxu0 0.0
          %558 = vmatpush1.msra.mxu0 %v533
          %559 = vmatprep.subr.mxu0 0.0
          %560 = vmatpush1.msra.mxu0 %v534
          %561 = vmatprep.subr.mxu0 0.0
          %562 = vmatpush1.msra.mxu0 %v535
          %563 = vmatprep.subr.mxu0 0.0
          %564 = vmatpush1.msra.mxu0 %v536
          %565 = vmatprep.subr.mxu0 0.0
          %566 = vmatpush1.msra.mxu0 %v537
          %567 = vmatprep.subr.mxu0 0.0
          %568 = vmatpush1.msra.mxu0 %v538
          %569 = vmatprep.subr.mxu0 0.0
          %570 = vmatpush1.msra.mxu0 %v539
          %571 = vmatprep.subr.mxu0 0.0
          %572 = vmatpush1.msra.mxu0 %v540
          %573 = vmatprep.subr.mxu0 0.0
          %574 = vmatpush1.msra.mxu0 %v541
          %575 = vmatprep.subr.mxu0 0.0
          %576 = vmatpush1.msra.mxu0 %v542
          %577 = vmatprep.subr.mxu0 0.0
          %578 = vmatpush1.msra.mxu0 %v543
          %579 = vmatprep.subr.mxu0 0.0
          %580 = vmatpush1.msra.mxu0 %v544
          %581 = vmatprep.subr.mxu0 0.0
          %582 = vmatpush1.msra.mxu0 %v545
          %583 = vmatprep.subr.mxu0 0.0
          %584 = vmatpush1.msra.mxu0 %v546
          %585 = vmatprep.subr.mxu0 0.0
          %586 = vmatpush1.msra.mxu0 %v547
          %587 = vmatprep.subr.mxu0 0.0
          %588 = vmatpush1.msra.mxu0 0.0
          %589 = vmatprep.subr.mxu0 0.0
          %590 = vmatpush1.msra.mxu0 0.0
          %591 = vmatprep.subr.mxu0 0.0
          %592 = vmatpush1.msra.mxu0 0.0
          %593 = vmatprep.subr.mxu0 0.0
          %594 = vmatpush1.msra.mxu0 0.0
          %595 = vmatprep.subr.mxu0 0.0
          %596 = vmatpush1.msra.mxu0 0.0
          %597 = vmatprep.subr.mxu0 0.0
          %598 = vmatpush1.msra.mxu0 0.0
          %599 = vmatprep.subr.mxu0 0.0
          %600 = vmatpush1.msra.mxu0 0.0
          %601 = vmatprep.subr.mxu0 0.0
          %602 = vmatpush1.msra.mxu0 0.0
          %603 = vmatprep.subr.mxu0 0.0
          %604 = vmatpush1.msra.mxu0 0.0
          %605 = vmatprep.subr.mxu0 0.0
          %606 = vmatpush1.msra.mxu0 0.0
          %607 = vmatprep.subr.mxu0 0.0
          %608 = vmatpush1.msra.mxu0 0.0
          %609 = vmatprep.subr.mxu0 0.0
          %610 = vmatpush1.msra.mxu0 0.0
          %611 = vmatprep.subr.mxu0 0.0
          %612 = vmatpush1.msra.mxu0 0.0
          %613 = vmatprep.subr.mxu0 0.0
          %614 = vmatpush1.msra.mxu0 0.0
          %615 = vmatprep.subr.mxu0 0.0
          %616 = vmatpush1.msra.mxu0 0.0
          %617 = vmatprep.subr.mxu0 0.0
          %618 = vmatpush1.msra.mxu0 0.0
          %619 = vmatprep.mubr.f32.mxu0 0.0
          %620 = vmatmul.mubr.f32.gmra.mrb[0].mxu0 %v531
          %v621 = vpop.f32.mrb[0].mxu0
          %v622 = vadd.f32 %v553, %v621
          %v623 = vpop.f32.mrb[0].mxu0
          %624 = vdwg.mxu0
          %625 = vxpose.xlu0.b32.start [1/16] %v528, 128
          %626 = vxpose.xlu0.b32.cont [2/16] 0.0, 128
          %627 = vxpose.xlu0.b32.cont [3/16] 0.0, 128
          %628 = vxpose.xlu0.b32.cont [4/16] 0.0, 128
          %629 = vxpose.xlu0.b32.cont [5/16] 0.0, 128
          %630 = vxpose.xlu0.b32.cont [6/16] 0.0, 128
          %631 = vxpose.xlu0.b32.cont [7/16] 0.0, 128
          %632 = vxpose.xlu0.b32.cont [8/16] 0.0, 128
          %633 = vxpose.xlu0.b32.cont [9/16] 0.0, 128
          %634 = vxpose.xlu0.b32.cont [10/16] 0.0, 128
          %635 = vxpose.xlu0.b32.cont [11/16] 0.0, 128
          %636 = vxpose.xlu0.b32.cont [12/16] 0.0, 128
          %637 = vxpose.xlu0.b32.cont [13/16] 0.0, 128
          %638 = vxpose.xlu0.b32.cont [14/16] 0.0, 128
          %639 = vxpose.xlu0.b32.cont [15/16] 0.0, 128
          %640 = vxpose.xlu0.b32.end [16/16] 0.0, 128
          %v641 = vpop.trf.xlu0
          %v642 = vpop.trf.xlu0
          %v643 = vpop.trf.xlu0
          %v644 = vpop.trf.xlu0
          %v645 = vpop.trf.xlu0
          %v646 = vpop.trf.xlu0
          %v647 = vpop.trf.xlu0
          %v648 = vpop.trf.xlu0
          %v649 = vpop.trf.xlu0
          %v650 = vpop.trf.xlu0
          %v651 = vpop.trf.xlu0
          %v652 = vpop.trf.xlu0
          %v653 = vpop.trf.xlu0
          %v654 = vpop.trf.xlu0
          %v655 = vpop.trf.xlu0
          %v656 = vpop.trf.xlu0
          %vm657 = vcmask 64512
          %658 = vst.msk [vmem:[#allocation2] sm:$0xff] %vm657, %v641
          %659 = vst.msk [vmem:[#allocation2 + $0x8] sm:$0xff] %vm657, %v642
          %660 = vst.msk [vmem:[#allocation2 + $0x10] sm:$0xff] %vm657, %v643
          %661 = vst.msk [vmem:[#allocation2 + $0x18] sm:$0xff] %vm657, %v644
          %662 = vst.msk [vmem:[#allocation2 + $0x20] sm:$0xff] %vm657, %v645
          %663 = vst.msk [vmem:[#allocation2 + $0x28] sm:$0xff] %vm657, %v646
          %664 = vst.msk [vmem:[#allocation2 + $0x30] sm:$0xff] %vm657, %v647
          %665 = vst.msk [vmem:[#allocation2 + $0x38] sm:$0xff] %vm657, %v648
          %666 = vst.msk [vmem:[#allocation2 + $0x40] sm:$0xff] %vm657, %v649
          %667 = vst.msk [vmem:[#allocation2 + $0x48] sm:$0xff] %vm657, %v650
          %668 = vst.msk [vmem:[#allocation2 + $0x50] sm:$0xff] %vm657, %v651
          %669 = vst.msk [vmem:[#allocation2 + $0x58] sm:$0xff] %vm657, %v652
          %670 = vst.msk [vmem:[#allocation2 + $0x60] sm:$0xff] %vm657, %v653
          %671 = vst.msk [vmem:[#allocation2 + $0x68] sm:$0xff] %vm657, %v654
          %672 = vst.msk [vmem:[#allocation2 + $0x70] sm:$0xff] %vm657, %v655
          %673 = vst.msk [vmem:[#allocation2 + $0x78] sm:$0xff] %vm657, %v656
          %674 = vst [vmem:[#allocation3] sm:$0xff] %v622
        $region60: #{_lambda_.1} parent=55 // pred_fallthru
          _
        %v675 = vld [vmem:[%s417] sm:$0xff]
        %v676 = vld [vmem:[%s3] sm:$0xff]
        %v677 = vld [vmem:[%s3 + $0x8] sm:$0xff]
        %v678 = vld [vmem:[%s3 + $0x10] sm:$0xff]
        %v679 = vld [vmem:[%s3 + $0x18] sm:$0xff]
        %v680 = vld [vmem:[%s3 + $0x20] sm:$0xff]
        %v681 = vld [vmem:[%s3 + $0x28] sm:$0xff]
        %v682 = vld [vmem:[%s3 + $0x30] sm:$0xff]
        %v683 = vld [vmem:[%s3 + $0x38] sm:$0xff]
        %v684 = vld [vmem:[%s3 + $0x40] sm:$0xff]
        %v685 = vld [vmem:[%s3 + $0x48] sm:$0xff]
        %v686 = vld [vmem:[%s3 + $0x50] sm:$0xff]
        %v687 = vld [vmem:[%s3 + $0x58] sm:$0xff]
        %v688 = vld [vmem:[%s3 + $0x60] sm:$0xff]
        %v689 = vld [vmem:[%s3 + $0x68] sm:$0xff]
        %v690 = vld [vmem:[%s3 + $0x70] sm:$0xff]
        %v691 = vld [vmem:[%s3 + $0x78] sm:$0xff]
        %v692 = vld [vmem:[%s6] sm:$0x1]
        %v694 = vlaneseq
        %v695 = vshrl.u32 %v694, 7
        %v696 = vsub.s32 0, %v695
        %v697 = vrot.slane %v692, %v696
        %699 = vmatprep.subr.mxu0 0.0
        %700 = vmatpush1.msra.mxu0 %v676
        %701 = vmatprep.subr.mxu0 0.0
        %702 = vmatpush1.msra.mxu0 %v677
        %703 = vmatprep.subr.mxu0 0.0
        %704 = vmatpush1.msra.mxu0 %v678
        %705 = vmatprep.subr.mxu0 0.0
        %706 = vmatpush1.msra.mxu0 %v679
        %707 = vmatprep.subr.mxu0 0.0
        %708 = vmatpush1.msra.mxu0 %v680
        %709 = vmatprep.subr.mxu0 0.0
        %710 = vmatpush1.msra.mxu0 %v681
        %711 = vmatprep.subr.mxu0 0.0
        %712 = vmatpush1.msra.mxu0 %v682
        %713 = vmatprep.subr.mxu0 0.0
        %714 = vmatpush1.msra.mxu0 %v683
        %715 = vmatprep.subr.mxu0 0.0
        %716 = vmatpush1.msra.mxu0 %v684
        %717 = vmatprep.subr.mxu0 0.0
        %718 = vmatpush1.msra.mxu0 %v685
        %719 = vmatprep.subr.mxu0 0.0
        %720 = vmatpush1.msra.mxu0 %v686
        %721 = vmatprep.subr.mxu0 0.0
        %722 = vmatpush1.msra.mxu0 %v687
        %723 = vmatprep.subr.mxu0 0.0
        %724 = vmatpush1.msra.mxu0 %v688
        %725 = vmatprep.subr.mxu0 0.0
        %726 = vmatpush1.msra.mxu0 %v689
        %727 = vmatprep.subr.mxu0 0.0
        %728 = vmatpush1.msra.mxu0 %v690
        %729 = vmatprep.subr.mxu0 0.0
        %730 = vmatpush1.msra.mxu0 %v691
        %731 = vmatprep.subr.mxu0 0.0
        %732 = vmatpush1.msra.mxu0 0.0
        %733 = vmatprep.subr.mxu0 0.0
        %734 = vmatpush1.msra.mxu0 0.0
        %735 = vmatprep.subr.mxu0 0.0
        %736 = vmatpush1.msra.mxu0 0.0
        %737 = vmatprep.subr.mxu0 0.0
        %738 = vmatpush1.msra.mxu0 0.0
        %739 = vmatprep.subr.mxu0 0.0
        %740 = vmatpush1.msra.mxu0 0.0
        %741 = vmatprep.subr.mxu0 0.0
        %742 = vmatpush1.msra.mxu0 0.0
        %743 = vmatprep.subr.mxu0 0.0
        %744 = vmatpush1.msra.mxu0 0.0
        %745 = vmatprep.subr.mxu0 0.0
        %746 = vmatpush1.msra.mxu0 0.0
        %747 = vmatprep.subr.mxu0 0.0
        %748 = vmatpush1.msra.mxu0 0.0
        %749 = vmatprep.subr.mxu0 0.0
        %750 = vmatpush1.msra.mxu0 0.0
        %751 = vmatprep.subr.mxu0 0.0
        %752 = vmatpush1.msra.mxu0 0.0
        %753 = vmatprep.subr.mxu0 0.0
        %754 = vmatpush1.msra.mxu0 0.0
        %755 = vmatprep.subr.mxu0 0.0
        %756 = vmatpush1.msra.mxu0 0.0
        %757 = vmatprep.subr.mxu0 0.0
        %758 = vmatpush1.msra.mxu0 0.0
        %759 = vmatprep.subr.mxu0 0.0
        %760 = vmatpush1.msra.mxu0 0.0
        %761 = vmatprep.subr.mxu0 0.0
        %762 = vmatpush1.msra.mxu0 0.0
        %763 = vmatprep.mubr.f32.mxu0 0.0
        %764 = vmatmul.mubr.f32.gmra.mrb[0].mxu0 %v675
        %v765 = vpop.f32.mrb[0].mxu0
        %v766 = vadd.f32 %v697, %v765
        %v767 = vpop.f32.mrb[0].mxu0
        %768 = vdwg.mxu0
        %v769 = vld [vmem:[#allocation2] sm:$0xff]
        %v770 = vld [vmem:[#allocation2 + $0x8] sm:$0xff]
        %v771 = vld [vmem:[#allocation2 + $0x10] sm:$0xff]
        %v772 = vld [vmem:[#allocation2 + $0x18] sm:$0xff]
        %v773 = vld [vmem:[#allocation2 + $0x20] sm:$0xff]
        %v774 = vld [vmem:[#allocation2 + $0x28] sm:$0xff]
        %v775 = vld [vmem:[#allocation2 + $0x30] sm:$0xff]
        %v776 = vld [vmem:[#allocation2 + $0x38] sm:$0xff]
        %v777 = vld [vmem:[#allocation2 + $0x40] sm:$0xff]
        %v778 = vld [vmem:[#allocation2 + $0x48] sm:$0xff]
        %v779 = vld [vmem:[#allocation2 + $0x50] sm:$0xff]
        %v780 = vld [vmem:[#allocation2 + $0x58] sm:$0xff]
        %v781 = vld [vmem:[#allocation2 + $0x60] sm:$0xff]
        %v782 = vld [vmem:[#allocation2 + $0x68] sm:$0xff]
        %v783 = vld [vmem:[#allocation2 + $0x70] sm:$0xff]
        %v784 = vld [vmem:[#allocation2 + $0x78] sm:$0xff]
        %785 = vmatprep.subr.mxu0 0.0
        %786 = vmatpush1.msra.mxu0 %v769
        %787 = vmatprep.subr.mxu0 0.0
        %788 = vmatpush1.msra.mxu0 %v770
        %789 = vmatprep.subr.mxu0 0.0
        %790 = vmatpush1.msra.mxu0 %v771
        %791 = vmatprep.subr.mxu0 0.0
        %792 = vmatpush1.msra.mxu0 %v772
        %793 = vmatprep.subr.mxu0 0.0
        %794 = vmatpush1.msra.mxu0 %v773
        %795 = vmatprep.subr.mxu0 0.0
        %796 = vmatpush1.msra.mxu0 %v774
        %797 = vmatprep.subr.mxu0 0.0
        %798 = vmatpush1.msra.mxu0 %v775
        %799 = vmatprep.subr.mxu0 0.0
        %800 = vmatpush1.msra.mxu0 %v776
        %801 = vmatprep.subr.mxu0 0.0
        %802 = vmatpush1.msra.mxu0 %v777
        %803 = vmatprep.subr.mxu0 0.0
        %804 = vmatpush1.msra.mxu0 %v778
        %805 = vmatprep.subr.mxu0 0.0
        %806 = vmatpush1.msra.mxu0 %v779
        %807 = vmatprep.subr.mxu0 0.0
        %808 = vmatpush1.msra.mxu0 %v780
        %809 = vmatprep.subr.mxu0 0.0
        %810 = vmatpush1.msra.mxu0 %v781
        %811 = vmatprep.subr.mxu0 0.0
        %812 = vmatpush1.msra.mxu0 %v782
        %813 = vmatprep.subr.mxu0 0.0
        %814 = vmatpush1.msra.mxu0 %v783
        %815 = vmatprep.subr.mxu0 0.0
        %816 = vmatpush1.msra.mxu0 %v784
        %817 = vmatprep.subr.mxu0 0.0
        %818 = vmatpush1.msra.mxu0 0.0
        %819 = vmatprep.subr.mxu0 0.0
        %820 = vmatpush1.msra.mxu0 0.0
        %821 = vmatprep.subr.mxu0 0.0
        %822 = vmatpush1.msra.mxu0 0.0
        %823 = vmatprep.subr.mxu0 0.0
        %824 = vmatpush1.msra.mxu0 0.0
        %825 = vmatprep.subr.mxu0 0.0
        %826 = vmatpush1.msra.mxu0 0.0
        %827 = vmatprep.subr.mxu0 0.0
        %828 = vmatpush1.msra.mxu0 0.0
        %829 = vmatprep.subr.mxu0 0.0
        %830 = vmatpush1.msra.mxu0 0.0
        %831 = vmatprep.subr.mxu0 0.0
        %832 = vmatpush1.msra.mxu0 0.0
        %833 = vmatprep.subr.mxu0 0.0
        %834 = vmatpush1.msra.mxu0 0.0
        %835 = vmatprep.subr.mxu0 0.0
        %836 = vmatpush1.msra.mxu0 0.0
        %837 = vmatprep.subr.mxu0 0.0
        %838 = vmatpush1.msra.mxu0 0.0
        %839 = vmatprep.subr.mxu0 0.0
        %840 = vmatpush1.msra.mxu0 0.0
        %841 = vmatprep.subr.mxu0 0.0
        %842 = vmatpush1.msra.mxu0 0.0
        %843 = vmatprep.subr.mxu0 0.0
        %844 = vmatpush1.msra.mxu0 0.0
        %845 = vmatprep.subr.mxu0 0.0
        %846 = vmatpush1.msra.mxu0 0.0
        %847 = vmatprep.subr.mxu0 0.0
        %848 = vmatpush1.msra.mxu0 0.0
        %849 = vmatprep.mubr.f32.mxu0 0.0
        %850 = vmatmul.mubr.f32.gmra.mrb[0].mxu0 %v766
        %v851 = vpop.f32.mrb[0].mxu0
        %v852 = vadd.f32 0.0, %v851
        %v853 = vpop.f32.mrb[0].mxu0
        %854 = vdwg.mxu0
        %vm855 = vcmask 64512
        %v856 = vsel %vm855, %v852, -inf
        %857 = vmax.xlane.f32.xlu0 %v856
        %v858 = vpop.xlane.xlu0 %857
        %v859 = vsub.f32 %v852, %v858
        %v860 = vmul.f32 %v859, 1.442695
        %v861 = vpow.pop %v860
        %v862 = vsel %vm855, %v861, 0.0
        %863 = vadd.xlane.f32.xlu0 %v862
        %v864 = vpop.xlane.xlu0 %863
        %v865 = vrcp.pop %v864
        %v866 = vmul.f32 %v864, %v865
        %v867 = vsub.f32 2.0, %v866
        %v868 = vmul.f32 %v865, %v867
        %v869 = vmul.f32 %v861, %v868
        %v870 = vld [vmem:[#allocation3] sm:$0xff]
        %v872 = vsel %vm855, %v869, 0
        %874 = vmatprep.subr.mxu0 0.0
        %875 = vmatpush1.msra.mxu0 %v870
        %876 = vmatprep.subr.mxu0 0.0
        %877 = vmatpush1.msra.mxu0 0.0
        %878 = vmatprep.subr.mxu0 0.0
        %879 = vmatpush1.msra.mxu0 0.0
        %880 = vmatprep.subr.mxu0 0.0
        %881 = vmatpush1.msra.mxu0 0.0
        %882 = vmatprep.subr.mxu0 0.0
        %883 = vmatpush1.msra.mxu0 0.0
        %884 = vmatprep.subr.mxu0 0.0
        %885 = vmatpush1.msra.mxu0 0.0
        %886 = vmatprep.subr.mxu0 0.0
        %887 = vmatpush1.msra.mxu0 0.0
        %888 = vmatprep.subr.mxu0 0.0
        %889 = vmatpush1.msra.mxu0 0.0
        %890 = vmatprep.subr.mxu0 0.0
        %891 = vmatpush1.msra.mxu0 0.0
        %892 = vmatprep.subr.mxu0 0.0
        %893 = vmatpush1.msra.mxu0 0.0
        %894 = vmatprep.subr.mxu0 0.0
        %895 = vmatpush1.msra.mxu0 0.0
        %896 = vmatprep.subr.mxu0 0.0
        %897 = vmatpush1.msra.mxu0 0.0
        %898 = vmatprep.subr.mxu0 0.0
        %899 = vmatpush1.msra.mxu0 0.0
        %900 = vmatprep.subr.mxu0 0.0
        %901 = vmatpush1.msra.mxu0 0.0
        %902 = vmatprep.subr.mxu0 0.0
        %903 = vmatpush1.msra.mxu0 0.0
        %904 = vmatprep.subr.mxu0 0.0
        %905 = vmatpush1.msra.mxu0 0.0
        %906 = vmatprep.subr.mxu0 0.0
        %907 = vmatpush1.msra.mxu0 0.0
        %908 = vmatprep.subr.mxu0 0.0
        %909 = vmatpush1.msra.mxu0 0.0
        %910 = vmatprep.subr.mxu0 0.0
        %911 = vmatpush1.msra.mxu0 0.0
        %912 = vmatprep.subr.mxu0 0.0
        %913 = vmatpush1.msra.mxu0 0.0
        %914 = vmatprep.subr.mxu0 0.0
        %915 = vmatpush1.msra.mxu0 0.0
        %916 = vmatprep.subr.mxu0 0.0
        %917 = vmatpush1.msra.mxu0 0.0
        %918 = vmatprep.subr.mxu0 0.0
        %919 = vmatpush1.msra.mxu0 0.0
        %920 = vmatprep.subr.mxu0 0.0
        %921 = vmatpush1.msra.mxu0 0.0
        %922 = vmatprep.subr.mxu0 0.0
        %923 = vmatpush1.msra.mxu0 0.0
        %924 = vmatprep.subr.mxu0 0.0
        %925 = vmatpush1.msra.mxu0 0.0
        %926 = vmatprep.subr.mxu0 0.0
        %927 = vmatpush1.msra.mxu0 0.0
        %928 = vmatprep.subr.mxu0 0.0
        %929 = vmatpush1.msra.mxu0 0.0
        %930 = vmatprep.subr.mxu0 0.0
        %931 = vmatpush1.msra.mxu0 0.0
        %932 = vmatprep.subr.mxu0 0.0
        %933 = vmatpush1.msra.mxu0 0.0
        %934 = vmatprep.subr.mxu0 0.0
        %935 = vmatpush1.msra.mxu0 0.0
        %936 = vmatprep.subr.mxu0 0.0
        %937 = vmatpush1.msra.mxu0 0.0
        %938 = vmatprep.mubr.f32.mxu0 0.0
        %939 = vmatmul.mubr.f32.gmra.mrb[0].mxu0 %v872
        %v940 = vpop.f32.mrb[0].mxu0
        %v941 = vadd.f32 0.0, %v940
        %v942 = vpop.f32.mrb[0].mxu0
        %943 = vdwg.mxu0
        %944 = vst [vmem:[%s432] sm:$0xff] %v941
        %945 = vst.msk [vmem:[%s410] sm:$0xff] %vm855, %v869
        %p946 = scmp.lt.s32.totalorder %s29, 1
        %s947 = scalar_select %p946, %s29, 1
        %p948 = scmp.lt.s32.totalorder %s30, 0
        %s949 = scalar_select %p948, %s30, 0
        %s950 = sadd.s32 %s949, %s947
        %s951 = smul.addr %s950, 8
        %s952 = scalar_lea.vmem %s9, %s951
        %s953 = sand.u32 %s281, 1
        %s954 = scalar_lea.sflag [#allocation5], %s953
        %s955 = sand.u32 %s281, 1
        %s956 = smul.addr %s955, 8
        %s957 = scalar_lea.vmem [#allocation4], %s956
        // Predicated region
        $region61: #{_lambda_.1} parent=55 // pred_check
          %p958 = pneg %p263
        $region62: #{_lambda_.1} parent=55 // pred_check_branch
          %960 = sbr.rel (%p958) target = $region64
        $region63: #{_lambda_.1} parent=55 // pred_region
          _
        $region64: #{_lambda_.1} parent=55 // pred_fallthru
          _
        // Predicated region
        $region65: #{_lambda_.1} parent=55 // pred_check
          %p961 = pneg %p291
        $region66: #{_lambda_.1} parent=55 // pred_check_branch
          %963 = sbr.rel (%p961) target = $region68
        $region67: #{_lambda_.1} parent=55 // pred_region
          %s965 = ssub.s32 128, 128
          %966 = vsyncadd %s954, %s965
          %s967 = sadd.s32 %s30, %s29
          %s968 = smul.addr %s967, 128
          %s969 = scalar_lea.hbm %s10, %s968
          %s971 = sshll.u32 %s957, 4
          %s972 = int_to_ptr.vmem [resolvable:$true] %s971
          %974 = dma.vmem_to_hbm [thread:$0]  %s972, 128, %s969, %s954
        $region68: #{_lambda_.1} parent=55 // pred_fallthru
          _
      $region56: #{_lambda_.1} parent=5 // pred_fallthru
        _
      %p975 = scmp.le.s32.totalorder 2, %s20
      // Predicated region
      $region69: #{_lambda_.1} parent=5 // pred_check
        %p976 = pneg %p975
      $region70: #{_lambda_.1} parent=5 // pred_check_branch
        %978 = sbr.rel (%p976) target = $region72
      $region71: #{_lambda_.1} parent=5 // pred_region
        %s979 = ssub.s32 %s20, 2
        // Predicated region
        $region73: #{_lambda_.1} parent=71 // pred_check
          %p980 = pneg %p269
        $region74: #{_lambda_.1} parent=71 // pred_check_branch
          %982 = sbr.rel (%p980) target = $region76
        $region75: #{_lambda_.1} parent=71 // pred_region
          %p983 = scmp.lt.s32.totalorder %s31, 1
          %s984 = scalar_select %p983, %s31, 1
          %p985 = scmp.lt.s32.totalorder %s32, 0
          %s986 = scalar_select %p985, %s32, 0
          %s987 = sadd.s32 %s986, %s984
          %s988 = smul.addr %s987, 8
          %s989 = scalar_lea.vmem %s9, %s988
        $region76: #{_lambda_.1} parent=71 // pred_fallthru
          _
        // Predicated region
        $region77: #{_lambda_.1} parent=71 // pred_check
          %p990 = pneg %p297
        $region78: #{_lambda_.1} parent=71 // pred_check_branch
          %992 = sbr.rel (%p990) target = $region80
        $region79: #{_lambda_.1} parent=71 // pred_region
          %s993 = sand.u32 %s282, 1
          %s994 = scalar_lea.sflag [#allocation5], %s993
          %s995 = sand.u32 %s282, 1
          %s996 = smul.addr %s995, 8
          %s997 = scalar_lea.vmem [#allocation4], %s996
          %998 = dma.done %s994, 128
        $region80: #{_lambda_.1} parent=71 // pred_fallthru
          _
      $region72: #{_lambda_.1} parent=5 // pred_fallthru
        _
    $region6: #{_lambda_.1} parent=1 // loop_footer
      %s24 = sadd.s32 1, %s20
    $region7: #{_lambda_.1} parent=1 // loop_footer_branch
      %19 = sbr.rel target = $region3
    $region8: #{_lambda_.1} parent=1 // loop_exit
      _
    %999 = vsyncpa [#allocation5], 1
    %s1000 = scalar_lea.sflag [#allocation5], 1
    %1001 = vsyncpa %s1000, 1

</llo_original>
